<compile_context>
chip_gen: v7x
topology: tpu7x:2x2x1
jax: 0.10.0
libtpu: 0.0.40
codegen_flags: <defaults>
</compile_context>

<pallas_src>
import functools

import jax
import jax.numpy as jnp
from jax.experimental import pallas as pl
from jax.experimental.pallas import tpu as pltpu


# ---------------------------------------------------------------------------
# Single-pass kernel: the whole spatial extent of each row tile is in VMEM.
# ---------------------------------------------------------------------------
def _instance_norm_kernel(x_ref, wb_ref, o_ref, *, eps, hw):
    # x_ref/o_ref: (block_rows, HW) tile.  wb_ref: (block_rows, 2) f32,
    # column 0 = weight, column 1 = bias for each (n, c) row.
    x = x_ref[...].astype(jnp.float32)            # f32 accumulation
    wb = wb_ref[...]
    w = wb[:, 0:1]
    b = wb[:, 1:2]

    mean = jnp.sum(x, axis=-1, keepdims=True) * (1.0 / hw)
    diff = x - mean
    # torch.std default is unbiased (Bessel).  max(hw-1, 1) guards H*W == 1
    # (torch would give NaN there; we return bias instead).
    var = jnp.sum(diff * diff, axis=-1, keepdims=True) * (1.0 / max(hw - 1, 1))
    std = jnp.sqrt(var)

    # Fold the affine into a per-row scalar: the full tile only sees one
    # multiply and one add (no full-tile divide, no masks).
    # TODO(synk): if a v7x bundle dump ever shows the VALU slot saturating,
    # move the two row reductions to the MXU via jnp.dot(x, ones((hw, 1))).
    scale = w / (std + jnp.float32(eps))
    o_ref[...] = (diff * scale + b).astype(o_ref.dtype)


# ---------------------------------------------------------------------------
# Two-pass path for very large H*W (minimum single-pass tile over budget):
# pass 1 streams HW blocks accumulating per-row sum / sum-of-squares and emits
# a fused per-row (scale, shift); pass 2 streams HW blocks applying it.
# ---------------------------------------------------------------------------
def _stats_kernel(x_ref, wb_ref, ss_ref, sum_ref, sq_ref, *, eps, hw, block_hw):
    j = pl.program_id(1)

    @pl.when(j == 0)
    def _():
        sum_ref[...] = jnp.zeros_like(sum_ref)
        sq_ref[...] = jnp.zeros_like(sq_ref)

    x = x_ref[...].astype(jnp.float32)
    if hw % block_hw != 0:
        # Boundary HW block: mask the stale (clamped-DMA) columns out of the
        # reductions.  Static branch: zero cost when block_hw divides HW.
        col = jax.lax.broadcasted_iota(jnp.int32, x.shape, 1) + j * block_hw
        x = jnp.where(col < hw, x, 0.0)

    sum_ref[...] += jnp.sum(x, axis=-1, keepdims=True)
    sq_ref[...] += jnp.sum(x * x, axis=-1, keepdims=True)

    @pl.when(j == pl.num_programs(1) - 1)
    def _():
        wb = wb_ref[...]
        w = wb[:, 0:1]
        b = wb[:, 1:2]
        mean = sum_ref[...] * (1.0 / hw)
        # Unbiased (Bessel) variance from the running sums; clamp the tiny
        # negative values E[x^2] - mean^2 cancellation can produce.
        var = (sq_ref[...] - hw * mean * mean) * (1.0 / max(hw - 1, 1))
        var = jnp.maximum(var, 0.0)
        scale = w / (jnp.sqrt(var) + jnp.float32(eps))
        ss_ref[:, 0:1] = scale
        ss_ref[:, 1:2] = b - mean * scale


def _apply_kernel(x_ref, ss_ref, o_ref):
    ss = ss_ref[...]
    x = x_ref[...].astype(jnp.float32)
    o_ref[...] = (x * ss[:, 0:1] + ss[:, 1:2]).astype(o_ref.dtype)


# ---------------------------------------------------------------------------
# Tiling / VMEM budgeting.
# ---------------------------------------------------------------------------
def _vmem_budgets():
    """(vmem_limit_bytes, tile_budget_bytes), gated on the part's VMEM size."""
    cap = 64 << 20
    try:
        cap = int(pltpu.get_tpu_info().vmem_capacity_bytes)
    except Exception:
        pass
    if cap >= (100 << 20):               # 128-MiB parts (v4 / v5e / v6e)
        return 96 << 20, 48 << 20
    if cap >= (48 << 20):                # v7x (64 MiB per TensorCore)
        return 40 << 20, 16 << 20
    # very small VMEM parts: stay well under the physical size
    return max(8 << 20, int(cap * 0.6)), max(4 << 20, int(cap * 0.25))


def _sublane(itemsize):
    return max(8, 32 // itemsize)        # 8 for f32, 16 for bf16


def _choose_block_rows(nc, hw, itemsize, tile_budget):
    """Largest sublane-aligned row tile whose footprint (double-buffered in +
    out tiles plus ~2 f32 full-tile temporaries) fits tile_budget.
    Returns 0 if even the minimal tile does not fit (=> two-pass path)."""
    sub = _sublane(itemsize)
    hw_lanes = ((hw + 127) // 128) * 128             # VMEM lane padding
    per_row = 4 * hw_lanes * itemsize + 2 * hw_lanes * 4
    max_by_budget = tile_budget // per_row
    if max_by_budget < min(nc, sub):
        return 0
    if nc <= sub:
        return nc                                    # full-extent row block
    target_grid = 8                                  # keep some pipeline depth
    max_by_grid = max(sub, nc // target_grid)
    br = min(max_by_budget, max_by_grid, nc)
    return max(sub, (br // sub) * sub)


def _choose_two_pass_tiles(nc, hw, itemsize, tile_budget):
    sub = _sublane(itemsize)
    if nc <= sub:
        br = nc
    else:
        br = max(sub, (min(nc, 8 * sub) // sub) * sub)
    per_col = br * (4 * itemsize + 8)                # dbl-buffered in/out + f32 tmp
    hw_cap = max(128, (hw // 128) * 128)             # keep block_hw <= HW
    bhw = (tile_budget // per_col) // 128 * 128
    bhw = max(128, min(bhw, hw_cap))
    return br, bhw


# ---------------------------------------------------------------------------
# Wrapper.
# ---------------------------------------------------------------------------
def instance_norm_2d(x, weight, bias, eps=1e-5, *, block_rows=None,
                     block_hw=None, force_two_pass=False):
    """x: (N, C, H, W); weight/bias: (1, C, 1) as in the PyTorch module."""
    N, C, H, W = x.shape
    NC, HW = N * C, H * W
    itemsize = jnp.dtype(x.dtype).itemsize
    vmem_limit, tile_budget = _vmem_budgets()

    xf = x.reshape(NC, HW)
    # weight/bias packed into one tiny (NC, 2) f32 array: col 0 = w, col 1 = b.
    w_flat = jnp.reshape(weight, (C,)).astype(jnp.float32)
    b_flat = jnp.reshape(bias, (C,)).astype(jnp.float32)
    wb = jnp.broadcast_to(jnp.stack([w_flat, b_flat], axis=-1)[None],
                          (N, C, 2)).reshape(NC, 2)

    br = block_rows if block_rows is not None else \
        _choose_block_rows(NC, HW, itemsize, tile_budget)
    two_pass = (br == 0) or (force_two_pass and HW >= 128)
    # TODO(synk): also prefer the two-pass HW split when NC is tiny but HW is
    # large-yet-fitting, purely to create enough grid steps for v7x megacore
    # sharding / DMA-compute overlap.

    if not two_pass:
        kernel = functools.partial(_instance_norm_kernel, eps=eps, hw=HW)
        out_flat = pl.pallas_call(
            kernel,
            out_shape=jax.ShapeDtypeStruct((NC, HW), x.dtype),
            grid=(pl.cdiv(NC, br),),
            in_specs=[
                pl.BlockSpec((br, HW), lambda i: (i, 0)),   # full-extent cols
                pl.BlockSpec((br, 2), lambda i: (i, 0)),    # per-block w/b
            ],
            out_specs=pl.BlockSpec((br, HW), lambda i: (i, 0)),
            compiler_params=pltpu.CompilerParams(
                dimension_semantics=("parallel",),
                vmem_limit_bytes=vmem_limit,
            ),
            cost_estimate=pl.CostEstimate(
                flops=6 * NC * HW,
                transcendentals=2 * NC,
                bytes_accessed=2 * NC * HW * itemsize + NC * 8,
            ),
        )(xf, wb)
    else:
        br2, bhw = _choose_two_pass_tiles(NC, HW, itemsize, tile_budget)
        if block_rows is not None:
            br2 = block_rows
        if block_hw is not None:
            bhw = block_hw
        grid = (pl.cdiv(NC, br2), pl.cdiv(HW, bhw))

        ss = pl.pallas_call(
            functools.partial(_stats_kernel, eps=eps, hw=HW, block_hw=bhw),
            out_shape=jax.ShapeDtypeStruct((NC, 2), jnp.float32),
            grid=grid,
            in_specs=[
                pl.BlockSpec((br2, bhw), lambda i, j: (i, j)),
                pl.BlockSpec((br2, 2), lambda i, j: (i, 0)),
            ],
            out_specs=pl.BlockSpec((br2, 2), lambda i, j: (i, 0)),
            scratch_shapes=[pltpu.VMEM((br2, 1), jnp.float32),
                            pltpu.VMEM((br2, 1), jnp.float32)],
            compiler_params=pltpu.CompilerParams(
                dimension_semantics=("parallel", "arbitrary"),
                vmem_limit_bytes=vmem_limit,
            ),
        )(xf, wb)

        out_flat = pl.pallas_call(
            _apply_kernel,
            out_shape=jax.ShapeDtypeStruct((NC, HW), x.dtype),
            grid=grid,
            in_specs=[
                pl.BlockSpec((br2, bhw), lambda i, j: (i, j)),
                pl.BlockSpec((br2, 2), lambda i, j: (i, 0)),
            ],
            out_specs=pl.BlockSpec((br2, bhw), lambda i, j: (i, j)),
            compiler_params=pltpu.CompilerParams(
                dimension_semantics=("parallel", "parallel"),
                vmem_limit_bytes=vmem_limit,
            ),
        )(xf, ss)

    return out_flat.reshape(N, C, H, W)


def instance_norm_2d_ref(x, weight, bias, eps=1e-5):
    """Pure-JAX reference mirroring the PyTorch forward exactly."""
    N, C, H, W = x.shape
    xv = x.reshape(N, C, -1)
    mean = jnp.mean(xv, axis=-1, keepdims=True)
    std = jnp.std(xv, axis=-1, keepdims=True, ddof=1)  # unbiased, like torch.std
    out = (xv - mean) / (std + eps) * weight + bias
    return out.reshape(N, C, H, W)


if __name__ == "__main__":
    key = jax.random.PRNGKey(0)
    k1, k2, k3 = jax.random.split(key, 3)
    N, C, H, W = 2, 4, 16, 16

    x = jax.random.normal(k1, (N, C, H, W), dtype=jnp.float32)
    # deterministic, non-trivial parameters (shape matches nn.Parameter(1, C, 1))
    weight = (1.0 + 0.1 * jnp.arange(C, dtype=jnp.float32)).reshape(1, C, 1)
    bias = (0.05 * jnp.arange(C, dtype=jnp.float32)).reshape(1, C, 1)

    # 1) default single-pass path (HW multiple of 128)
    out = jax.block_until_ready(instance_norm_2d(x, weight, bias, eps=1e-5))
    ref = instance_norm_2d_ref(x, weight, bias, eps=1e-5)
    assert out.shape == (N, C, H, W)
    assert jnp.allclose(out, ref, atol=1e-5, rtol=1e-5), "single-pass mismatch"

    # 2) HW not a multiple of 128: full-extent last-dim block, no pad/slice
    x2 = jax.random.normal(k2, (2, 4, 10, 10), dtype=jnp.float32)
    out2 = jax.block_until_ready(instance_norm_2d(x2, weight, bias, eps=1e-5))
    ref2 = instance_norm_2d_ref(x2, weight, bias, eps=1e-5)
    assert jnp.allclose(out2, ref2, atol=1e-5, rtol=1e-5), "odd-HW mismatch"

    # 3) forced two-pass (large-HW fallback) path, incl. boundary HW block
    x3 = jax.random.normal(k3, (2, 4, 12, 12), dtype=jnp.float32)
    out3 = jax.block_until_ready(
        instance_norm_2d(x3, weight, bias, eps=1e-5,
                         force_two_pass=True, block_hw=128))
    ref3 = instance_norm_2d_ref(x3, weight, bias, eps=1e-5)
    assert jnp.allclose(out3, ref3, atol=1e-5, rtol=1e-5), "two-pass mismatch"

    print("KERNEL_OK")
</pallas_src>

<mosaic_0001>
module attributes {stable_mosaic.version = 11 : i64} {
  func.func @_instance_norm_kernel(%arg0: i32, %arg1: memref<8x256xf32, #tpu.memory_space<vmem>>, %arg2: memref<8x2xf32, #tpu.memory_space<vmem>>, %arg3: memref<8x256xf32, #tpu.memory_space<vmem>>) attributes {dimension_semantics = [#tpu.dimension_semantics<parallel>], iteration_bounds = array<i64: 1>, scalar_prefetch = 0 : i64, scratch_operands = 0 : i64, tpu.core_type = #tpu.core_type<tc>, window_params = [{transform_indices = @transform_0, window_bounds = array<i64: 8, 256>}, {transform_indices = @transform_1, window_bounds = array<i64: 8, 2>}, {transform_indices = @transform_2, window_bounds = array<i64: 8, 256>}]} {
    %c0 = arith.constant 0 : index
    %c0_0 = arith.constant 0 : index
    %0 = vector.load %arg1[%c0, %c0_0] : memref<8x256xf32, #tpu.memory_space<vmem>>, vector<8x256xf32>
    %c0_1 = arith.constant 0 : index
    %c0_2 = arith.constant 0 : index
    %1 = vector.load %arg2[%c0_1, %c0_2] : memref<8x2xf32, #tpu.memory_space<vmem>>, vector<8x2xf32>
    %2 = vector.extract_strided_slice %1 {offsets = [0, 0], sizes = [8, 1], strides = [1, 1]} : vector<8x2xf32> to vector<8x1xf32>
    %3 = vector.extract_strided_slice %1 {offsets = [0, 1], sizes = [8, 1], strides = [1, 1]} : vector<8x2xf32> to vector<8x1xf32>
    %cst = arith.constant dense<0.000000e+00> : vector<8xf32>
    %4 = vector.multi_reduction <add>, %0, %cst [1] : vector<8x256xf32> to vector<8xf32>
    %5 = vector.shape_cast %4 : vector<8xf32> to vector<8x1xf32>
    %cst_3 = arith.constant 3.906250e-03 : f32
    %6 = vector.broadcast %cst_3 : f32 to vector<8x1xf32>
    %7 = arith.mulf %5, %6 : vector<8x1xf32>
    %8 = vector.broadcast %7 : vector<8x1xf32> to vector<8x256xf32>
    %9 = arith.subf %0, %8 : vector<8x256xf32>
    %10 = arith.mulf %9, %9 : vector<8x256xf32>
    %cst_4 = arith.constant dense<0.000000e+00> : vector<8xf32>
    %11 = vector.multi_reduction <add>, %10, %cst_4 [1] : vector<8x256xf32> to vector<8xf32>
    %12 = vector.shape_cast %11 : vector<8xf32> to vector<8x1xf32>
    %cst_5 = arith.constant 0.00392156886 : f32
    %13 = vector.broadcast %cst_5 : f32 to vector<8x1xf32>
    %14 = arith.mulf %12, %13 : vector<8x1xf32>
    %15 = math.sqrt %14 : vector<8x1xf32>
    %cst_6 = arith.constant 9.99999974E-6 : f32
    %16 = vector.broadcast %cst_6 : f32 to vector<8x1xf32>
    %17 = arith.addf %15, %16 : vector<8x1xf32>
    %18 = arith.divf %2, %17 : vector<8x1xf32>
    %19 = vector.broadcast %18 : vector<8x1xf32> to vector<8x256xf32>
    %20 = arith.mulf %9, %19 : vector<8x256xf32>
    %21 = vector.broadcast %3 : vector<8x1xf32> to vector<8x256xf32>
    %22 = arith.addf %20, %21 : vector<8x256xf32>
    %c0_7 = arith.constant 0 : index
    %c0_8 = arith.constant 0 : index
    %23 = vector.load %arg3[%c0_7, %c0_8] : memref<8x256xf32, #tpu.memory_space<vmem>>, vector<8x256xf32>
    tpu.vector_store %arg3[%c0_7, %c0_8], %22 {strides = array<i32>} : memref<8x256xf32, #tpu.memory_space<vmem>>, vector<8x256xf32>,
    return
  }
  func.func @transform_0(%arg0: i32) -> (i32, i32) {
    %c0_i32 = arith.constant 0 : i32
    %c0_i32_0 = arith.constant 0 : i32
    return %arg0, %c0_i32 : i32, i32
  }
  func.func @transform_1(%arg0: i32) -> (i32, i32) {
    %c0_i32 = arith.constant 0 : i32
    %c0_i32_0 = arith.constant 0 : i32
    return %arg0, %c0_i32 : i32, i32
  }
  func.func @transform_2(%arg0: i32) -> (i32, i32) {
    %c0_i32 = arith.constant 0 : i32
    %c0_i32_0 = arith.constant 0 : i32
    return %arg0, %c0_i32 : i32, i32
  }
}

</mosaic_0001>

<llo_original>
// kernel: tpu_custom_call.1
$region0: #{tpu_custom_call.1}
  #allocation0 [shape = 'u32[]', space=smem, size = 0x4, offset = 0x4, fixed_abs, tag = 'smem constant byte address 0x4 - core index']
  #allocation1 [shape = 'u32[144,128]{1,0:T(1,128)}', space=vmem, size = 0x12000, scoped, tag = 'internal scratch']
  %s0 = inlined_call_operand.hbm [shape: f32[8,256], index: 0, kind: input, shape index: {}]
  %s1 = inlined_call_operand.vmem [shape: f32[8,2], index: 1, kind: input, shape index: {}]
  %s2 = inlined_call_operand.hbm [shape: f32[8,256], index: 2, kind: output, shape index: {}]
  %s3 = sld [smem:[#allocation0]]
  $region22: #{tpu_custom_call.1} parent=0
    _
  %s5 = ssub.s32 1, %s3
  %s6 = scalar_select 0, %s5, %s3
  $region1: #{tpu_custom_call.1} parent=0
    #allocation2 [shape = 'u8[8192]{0}', space=vmem, size = 0x2000, scoped, tag = 'input window, operand 0, single buffered']
    #allocation3 [shape = 's32[1]{0}', space=sflag, size = 0x4, scoped, tag = 'scoped memory for tpu_custom_call.1']
    #allocation4 [shape = 's32[1]{0}', space=sflag, size = 0x4, scoped, tag = 'scoped memory for tpu_custom_call.1']
    #allocation5 [shape = 'u8[8192]{0}', space=vmem, size = 0x2000, scoped, tag = 'output window, operand 0, single buffered']
    %7 = vsyncpa [#allocation3], 0
    %8 = vsyncpa [#allocation4], 0
    // Predicated region
    $region2: #{tpu_custom_call.1} parent=1 // pred_check
      _
    $region3: #{tpu_custom_call.1} parent=1 // pred_check_branch
      %10 = sbr.rel (0) target = $region5
    $region4: #{tpu_custom_call.1} parent=1 // pred_region
      %s12 = ssub.s32 256, 256
      %13 = vsyncadd [#allocation3], %s12
      %s15 = sshll.u32 [#allocation2], 4
      %s16 = int_to_ptr.vmem [resolvable:$true] %s15
      %18 = dma.hbm_to_vmem [thread:$0]  %s0, 256, %s16, [#allocation3]
    $region5: #{tpu_custom_call.1} parent=1 // pred_fallthru
      _
    // Predicated region
    $region6: #{tpu_custom_call.1} parent=1 // pred_check
      _
    $region7: #{tpu_custom_call.1} parent=1 // pred_check_branch
      %20 = sbr.rel (0) target = $region9
    $region8: #{tpu_custom_call.1} parent=1 // pred_region
      _
    $region9: #{tpu_custom_call.1} parent=1 // pred_fallthru
      _
    // Predicated region
    $region10: #{tpu_custom_call.1} parent=1 // pred_check
      _
    $region11: #{tpu_custom_call.1} parent=1 // pred_check_branch
      %22 = sbr.rel (0) target = $region13
    $region12: #{tpu_custom_call.1} parent=1 // pred_region
      %23 = dma.done [#allocation3], 256
    $region13: #{tpu_custom_call.1} parent=1 // pred_fallthru
      _
    %v24 = vld [vmem:[#allocation2] sm:$0xff]
    %v25 = vld [vmem:[#allocation2 + $0x8] sm:$0xff]
    %v26 = vld [vmem:[%s1] sm:$0xff]
    %v27 = vadd.f32 %v24, %v25
    %28 = vadd.xlane.f32.xlu0 %v27
    %v29 = vpop.xlane.xlu0 %28
    %v30 = vmul.f32 %v29, 0.00390625
    %v31 = vsub.f32 %v24, %v30
    %v32 = vsub.f32 %v25, %v30
    %v33 = vmul.f32 %v31, %v31
    %v34 = vmul.f32 %v32, %v32
    %v35 = vadd.f32 %v33, %v34
    %36 = vadd.xlane.f32.xlu0 %v35
    %v37 = vpop.xlane.xlu0 %36
    %v38 = vmul.f32 %v37, 0.003921569
    %v39 = vrsqrt.pop %v38
    %v40 = vmul.f32 %v38, %v39
    %vm41 = vcmp.eq.f32.partialorder %v38, inf
    %v42 = vsel %vm41, %v38, %v40
    %vm43 = vcmp.eq.f32.partialorder %v38, 0.0
    %v44 = vand.u32 %v38, 2147483648
    %v45 = vsel %vm43, %v44, %v42
    %v46 = vadd.f32 %v45, 1e-05
    %v47 = vrcp.pop %v46
    %v48 = vmul.f32 %v26, %v47
    %50 = vset.pattern.permute.xlu0 0
    %51 = vperm.xlu0 %50, %v48
    %v52 = vpop.permute.xlu0 %51
    %v54 = vmul.f32 %v31, %v52
    %v55 = vmul.f32 %v32, %v52
    %57 = vset.pattern.permute.xlu0 1
    %58 = vperm.xlu0 %57, %v26
    %v59 = vpop.permute.xlu0 %58
    %v61 = vadd.f32 %v54, %v59
    %v62 = vadd.f32 %v55, %v59
    %63 = vst [vmem:[#allocation5] sm:$0xff] %v61
    %64 = vst [vmem:[#allocation5 + $0x8] sm:$0xff] %v62
    // Predicated region
    $region14: #{tpu_custom_call.1} parent=1 // pred_check
      _
    $region15: #{tpu_custom_call.1} parent=1 // pred_check_branch
      %66 = sbr.rel (0) target = $region17
    $region16: #{tpu_custom_call.1} parent=1 // pred_region
      %s68 = ssub.s32 256, 256
      %69 = vsyncadd [#allocation4], %s68
      %s71 = sshll.u32 [#allocation5], 4
      %s72 = int_to_ptr.vmem [resolvable:$true] %s71
      %74 = dma.vmem_to_hbm [thread:$0]  %s72, 256, %s2, [#allocation4]
    $region17: #{tpu_custom_call.1} parent=1 // pred_fallthru
      _
    // Predicated region
    $region18: #{tpu_custom_call.1} parent=1 // pred_check
      _
    $region19: #{tpu_custom_call.1} parent=1 // pred_check_branch
      %76 = sbr.rel (0) target = $region21
    $region20: #{tpu_custom_call.1} parent=1 // pred_region
      %77 = dma.done [#allocation4], 256
    $region21: #{tpu_custom_call.1} parent=1 // pred_fallthru
      _
    %78 = vsyncpa [#allocation3], 1
    %79 = vsyncpa [#allocation4], 1

</llo_original>
